<compile_context>
chip_gen: v6e
topology: v6e:2x2x1
jax: 0.10.0
libtpu: 0.0.40
codegen_flags: <defaults>
</compile_context>

<pallas_src>
import functools

import jax
import jax.numpy as jnp
from jax.experimental import pallas as pl
from jax.experimental.pallas import tpu as pltpu


_TARGET_BLOCK_BYTES = 4 << 20    # combined stream bytes per grid step
_FIT_BUDGET_BYTES = 24 << 20     # "does a minimum-height slab fit comfortably"
_VMEM_LIMIT_BYTES = 32 << 20     # modest scoped-VMEM request (ample on v7x)
_MIN_GRID_STEPS = 8              # >= 4 pipelined steps per core on v7x
_LANE = 128


# ---------------------------------------------------------------------------
# helpers
# ---------------------------------------------------------------------------

def _round_down(x, m):
    return (x // m) * m


def _min_rows_for_dtype(dtype):
    # sublane packing: f32 -> 8, bf16 -> 16, int8/fp8 -> 32
    return {4: 8, 2: 16, 1: 32}.get(jnp.dtype(dtype).itemsize, 8)


def _pick_row_block(rows, bytes_per_row, min_rows):
    """Row tile sized for ~_TARGET_BLOCK_BYTES/step and >= _MIN_GRID_STEPS."""
    if rows <= min_rows:
        return rows                                   # block == full dim
    by_bytes = max(min_rows,
                   _round_down(_TARGET_BLOCK_BYTES // max(bytes_per_row, 1),
                               min_rows))
    by_grid = max(min_rows, _round_down(rows // _MIN_GRID_STEPS, min_rows))
    rb = min(by_bytes, by_grid, _round_down(rows, min_rows))
    return max(min_rows, rb)


def _pick_hw_block(hw, min_rows, itemsize, override=None):
    if override is not None:
        return override
    if hw <= _LANE:
        return hw
    cap = _TARGET_BLOCK_BYTES // max(2 * min_rows * itemsize, 1)
    if hw <= cap:
        return hw
    return max(_LANE, _round_down(min(hw, cap), _LANE))


# ---------------------------------------------------------------------------
# kernels
# ---------------------------------------------------------------------------

def _fused_kernel(c_ref, s_ref, o_ref, *, inv_hw_c, inv_hw_s):
    """Both slabs resident: per-row means + elementwise update in one pass."""
    c = c_ref[...]
    s = s_ref[...]
    c_mean = jnp.sum(c, axis=-1, keepdims=True, dtype=jnp.float32) * inv_hw_c
    s_mean = jnp.sum(s, axis=-1, keepdims=True, dtype=jnp.float32) * inv_hw_s
    o_ref[...] = c + (s_mean - c_mean).astype(o_ref.dtype)


def _content_mean_apply_kernel(c_ref, sm_ref, o_ref, *, inv_hw_c):
    """Content slab resident; style mean precomputed as a (rows,1) input."""
    c = c_ref[...]
    c_mean = jnp.sum(c, axis=-1, keepdims=True, dtype=jnp.float32) * inv_hw_c
    o_ref[...] = c + (sm_ref[...] - c_mean).astype(o_ref.dtype)


def _row_mean_kernel(x_ref, m_ref, *, inv_hw, hw, hw_block, need_mask):
    """Per-row mean with an 'arbitrary' HW axis; mask only the partial block."""
    j = pl.program_id(1)
    last = pl.num_programs(1) - 1

    @pl.when(j == 0)
    def _():
        m_ref[...] = jnp.zeros_like(m_ref)

    def _accum(masked):
        x = x_ref[...]
        if masked:
            col = j * hw_block + jax.lax.broadcasted_iota(jnp.int32, x.shape, 1)
            x = jnp.where(col < hw, x, jnp.zeros_like(x))
        m_ref[...] += jnp.sum(x, axis=-1, keepdims=True, dtype=jnp.float32)

    if need_mask:
        @pl.when(j != last)
        def _():
            _accum(False)

        @pl.when(j == last)
        def _():
            _accum(True)
    else:
        _accum(False)

    @pl.when(j == last)
    def _():
        m_ref[...] = m_ref[...] * inv_hw


def _apply_two_means_kernel(c_ref, cm_ref, sm_ref, o_ref):
    """Elementwise apply; delta computed in-kernel from both (rows,1) means."""
    o_ref[...] = c_ref[...] + (sm_ref[...] - cm_ref[...]).astype(o_ref.dtype)


# ---------------------------------------------------------------------------
# pallas_call wrappers
# ---------------------------------------------------------------------------

def _fused(c2d, s2d):
    rows, hw_c = c2d.shape
    hw_s = s2d.shape[1]
    itc = jnp.dtype(c2d.dtype).itemsize
    its = jnp.dtype(s2d.dtype).itemsize
    min_rows = max(_min_rows_for_dtype(c2d.dtype),
                   _min_rows_for_dtype(s2d.dtype))
    bytes_per_row = 2 * hw_c * itc + hw_s * its       # c in + out + s in
    row_block = _pick_row_block(rows, bytes_per_row, min_rows)
    kernel = functools.partial(_fused_kernel,
                               inv_hw_c=float(1.0 / hw_c),
                               inv_hw_s=float(1.0 / hw_s))
    return pl.pallas_call(
        kernel,
        out_shape=jax.ShapeDtypeStruct((rows, hw_c), c2d.dtype),
        grid_spec=pltpu.PrefetchScalarGridSpec(
            num_scalar_prefetch=0,
            grid=(pl.cdiv(rows, row_block),),
            in_specs=[pl.BlockSpec((row_block, hw_c), lambda i: (i, 0)),
                      pl.BlockSpec((row_block, hw_s), lambda i: (i, 0))],
            out_specs=pl.BlockSpec((row_block, hw_c), lambda i: (i, 0)),
        ),
        compiler_params=pltpu.CompilerParams(
            dimension_semantics=("parallel",),
            vmem_limit_bytes=_VMEM_LIMIT_BYTES,
        ),
        cost_estimate=pl.CostEstimate(
            flops=2 * rows * hw_c + rows * hw_s,
            transcendentals=0,
            bytes_accessed=2 * rows * hw_c * itc + rows * hw_s * its,
        ),
    )(c2d, s2d)


def _row_means(x2d, *, hw_block=None):
    rows, hw = x2d.shape
    it = jnp.dtype(x2d.dtype).itemsize
    min_rows = _min_rows_for_dtype(x2d.dtype)
    hw_block = _pick_hw_block(hw, min_rows, it, hw_block)
    need_mask = (hw % hw_block) != 0
    bytes_per_row = hw_block * it
    row_block = _pick_row_block(rows, bytes_per_row, min_rows)
    kernel = functools.partial(_row_mean_kernel, inv_hw=float(1.0 / hw),
                               hw=hw, hw_block=hw_block, need_mask=need_mask)
    return pl.pallas_call(
        kernel,
        out_shape=jax.ShapeDtypeStruct((rows, 1), jnp.float32),
        grid_spec=pltpu.PrefetchScalarGridSpec(
            num_scalar_prefetch=0,
            grid=(pl.cdiv(rows, row_block), pl.cdiv(hw, hw_block)),
            in_specs=[pl.BlockSpec((row_block, hw_block), lambda i, j: (i, j))],
            out_specs=pl.BlockSpec((row_block, 1), lambda i, j: (i, 0)),
        ),
        compiler_params=pltpu.CompilerParams(
            dimension_semantics=("parallel", "arbitrary"),
            vmem_limit_bytes=_VMEM_LIMIT_BYTES,
        ),
        cost_estimate=pl.CostEstimate(
            flops=rows * hw,
            transcendentals=0,
            bytes_accessed=rows * hw * it + rows * 4,
        ),
    )(x2d)


def _content_mean_apply(c2d, s_mean):
    rows, hw_c = c2d.shape
    it = jnp.dtype(c2d.dtype).itemsize
    min_rows = _min_rows_for_dtype(c2d.dtype)
    bytes_per_row = 2 * hw_c * it + 4                 # c in + out + s_mean
    row_block = _pick_row_block(rows, bytes_per_row, min_rows)
    kernel = functools.partial(_content_mean_apply_kernel,
                               inv_hw_c=float(1.0 / hw_c))
    return pl.pallas_call(
        kernel,
        out_shape=jax.ShapeDtypeStruct((rows, hw_c), c2d.dtype),
        grid_spec=pltpu.PrefetchScalarGridSpec(
            num_scalar_prefetch=0,
            grid=(pl.cdiv(rows, row_block),),
            in_specs=[pl.BlockSpec((row_block, hw_c), lambda i: (i, 0)),
                      pl.BlockSpec((row_block, 1), lambda i: (i, 0))],
            out_specs=pl.BlockSpec((row_block, hw_c), lambda i: (i, 0)),
        ),
        compiler_params=pltpu.CompilerParams(
            dimension_semantics=("parallel",),
            vmem_limit_bytes=_VMEM_LIMIT_BYTES,
        ),
        cost_estimate=pl.CostEstimate(
            flops=2 * rows * hw_c,
            transcendentals=0,
            bytes_accessed=2 * rows * hw_c * it + rows * 4,
        ),
    )(c2d, s_mean)


def _apply_two_means(c2d, c_mean, s_mean, *, hw_block=None):
    rows, hw = c2d.shape
    it = jnp.dtype(c2d.dtype).itemsize
    min_rows = _min_rows_for_dtype(c2d.dtype)
    hw_block = _pick_hw_block(hw, min_rows, it, hw_block)
    bytes_per_row = 2 * hw_block * it + 8
    row_block = _pick_row_block(rows, bytes_per_row, min_rows)
    return pl.pallas_call(
        _apply_two_means_kernel,
        out_shape=jax.ShapeDtypeStruct((rows, hw), c2d.dtype),
        grid_spec=pltpu.PrefetchScalarGridSpec(
            num_scalar_prefetch=0,
            grid=(pl.cdiv(rows, row_block), pl.cdiv(hw, hw_block)),
            in_specs=[pl.BlockSpec((row_block, hw_block), lambda i, j: (i, j)),
                      pl.BlockSpec((row_block, 1), lambda i, j: (i, 0)),
                      pl.BlockSpec((row_block, 1), lambda i, j: (i, 0))],
            out_specs=pl.BlockSpec((row_block, hw_block), lambda i, j: (i, j)),
        ),
        compiler_params=pltpu.CompilerParams(
            dimension_semantics=("parallel", "parallel"),
            vmem_limit_bytes=_VMEM_LIMIT_BYTES,
        ),
        cost_estimate=pl.CostEstimate(
            flops=2 * rows * hw,
            transcendentals=0,
            bytes_accessed=2 * rows * hw * it + 8 * rows,
        ),
    )(c2d, c_mean, s_mean)


# ---------------------------------------------------------------------------
# public wrapper
# ---------------------------------------------------------------------------

def ada_mean(content_feat, style_feat, *, path="auto", two_pass_hw_block=None):
    """AdaMean forward. content_feat: (N,C,H,W); style_feat: (N,C,Hs,Ws)."""
    assert content_feat.ndim == 4 and style_feat.ndim == 4
    assert content_feat.shape[:2] == style_feat.shape[:2]
    N, C, H, W = content_feat.shape
    Hs, Ws = style_feat.shape[2:]
    hw_c, hw_s = H * W, Hs * Ws
    rows = N * C

    c2d = content_feat.reshape(rows, hw_c)
    s2d = style_feat.reshape(rows, hw_s)              # keep style's own dtype

    itc = jnp.dtype(c2d.dtype).itemsize
    its = jnp.dtype(s2d.dtype).itemsize
    min_rows_both = max(_min_rows_for_dtype(c2d.dtype),
                        _min_rows_for_dtype(s2d.dtype))
    min_rows_c = _min_rows_for_dtype(c2d.dtype)

    # Can a minimum-height slab (x2 pipeline buffers) live in VMEM comfortably?
    fused_bytes = min(rows, min_rows_both) * (2 * hw_c * itc + hw_s * its) * 2
    content_bytes = min(rows, min_rows_c) * (2 * hw_c * itc) * 2

    if path == "auto":
        if fused_bytes <= _FIT_BUDGET_BYTES:
            path = "fused"
        elif content_bytes <= _FIT_BUDGET_BYTES:
            path = "smean"          # content still read exactly once from HBM
        else:
            path = "two_pass"

    if path == "fused":
        out2d = _fused(c2d, s2d)
    elif path == "smean":
        s_mean = _row_means(s2d, hw_block=two_pass_hw_block)
        out2d = _content_mean_apply(c2d, s_mean)
    elif path == "two_pass":
        c_mean = _row_means(c2d, hw_block=two_pass_hw_block)
        s_mean = _row_means(s2d, hw_block=two_pass_hw_block)
        out2d = _apply_two_means(c2d, c_mean, s_mean,
                                 hw_block=two_pass_hw_block)
    else:
        raise ValueError(f"unknown path {path!r}")

    return out2d.reshape(N, C, H, W)


# ---------------------------------------------------------------------------
# reference + test
# ---------------------------------------------------------------------------

def _reference(content_feat, style_feat):
    c = content_feat.astype(jnp.float32)
    s = style_feat.astype(jnp.float32)
    N, C = c.shape[:2]
    c_mean = c.reshape(N, C, -1).mean(axis=2)[:, :, None, None]
    s_mean = s.reshape(N, C, -1).mean(axis=2)[:, :, None, None]
    return c - c_mean + s_mean


if __name__ == "__main__":
    key = jax.random.PRNGKey(0)
    k1, k2, k3, k4, k5 = jax.random.split(key, 5)

    N, C, H, W = 2, 4, 16, 16
    content = jax.random.normal(k1, (N, C, H, W), dtype=jnp.float32)
    style = jax.random.normal(k2, (N, C, H, W), dtype=jnp.float32) * 2.0 + 0.5
    # style with a different spatial size (module only requires matching N, C)
    style_small = jax.random.normal(k3, (N, C, 8, 8), dtype=jnp.float32) * 1.5 - 0.25
    # non-128-multiple lane axis, to exercise partial-block masking paths
    content_odd = jax.random.normal(k4, (N, C, 12, 12), dtype=jnp.float32)
    style_odd = jax.random.normal(k5, (N, C, 12, 12), dtype=jnp.float32) * 0.7 + 1.0
    content_bf16 = content.astype(jnp.bfloat16)

    checks = []
    # main fused path
    checks.append((ada_mean(content, style),
                   _reference(content, style), 1e-5))
    # fused path, style with different H, W
    checks.append((ada_mean(content, style_small),
                   _reference(content, style_small), 1e-5))
    # forced style-mean pre-pass path
    checks.append((ada_mean(content, style, path="smean"),
                   _reference(content, style), 1e-5))
    # fused path, non-128-multiple HW (full-dim blocks)
    checks.append((ada_mean(content_odd, style_odd),
                   _reference(content_odd, style_odd), 1e-5))
    # forced two-pass path with a multi-block (masked) HW axis
    checks.append((ada_mean(content_odd, style_odd, path="two_pass",
                            two_pass_hw_block=128),
                   _reference(content_odd, style_odd), 1e-5))
    # mixed dtypes: style mean summed in f32 from its own dtype (no pre-cast)
    checks.append((ada_mean(content_bf16, style),
                   _reference(content_bf16, style), 5e-2))

    jax.block_until_ready([o for o, _, _ in checks])

    for out, ref, tol in checks:
        assert out.shape == ref.shape
        err = float(jnp.max(jnp.abs(out.astype(jnp.float32) - ref)))
        assert err <= tol, err

    print("KERNEL_OK")
</pallas_src>

<mosaic_0001>
module attributes {stable_mosaic.version = 11 : i64} {
  func.func @_fused_kernel(%arg0: i32, %arg1: memref<8x256xf32, #tpu.memory_space<vmem>>, %arg2: memref<8x256xf32, #tpu.memory_space<vmem>>, %arg3: memref<8x256xf32, #tpu.memory_space<vmem>>) attributes {dimension_semantics = [#tpu.dimension_semantics<parallel>], iteration_bounds = array<i64: 1>, scalar_prefetch = 0 : i64, scratch_operands = 0 : i64, tpu.core_type = #tpu.core_type<tc>, window_params = [{transform_indices = @transform_0, window_bounds = array<i64: 8, 256>}, {transform_indices = @transform_1, window_bounds = array<i64: 8, 256>}, {transform_indices = @transform_2, window_bounds = array<i64: 8, 256>}]} {
    %c0 = arith.constant 0 : index
    %c0_0 = arith.constant 0 : index
    %0 = vector.load %arg1[%c0, %c0_0] : memref<8x256xf32, #tpu.memory_space<vmem>>, vector<8x256xf32>
    %c0_1 = arith.constant 0 : index
    %c0_2 = arith.constant 0 : index
    %1 = vector.load %arg2[%c0_1, %c0_2] : memref<8x256xf32, #tpu.memory_space<vmem>>, vector<8x256xf32>
    %cst = arith.constant dense<0.000000e+00> : vector<8xf32>
    %2 = vector.multi_reduction <add>, %0, %cst [1] : vector<8x256xf32> to vector<8xf32>
    %3 = vector.shape_cast %2 : vector<8xf32> to vector<8x1xf32>
    %cst_3 = arith.constant 3.906250e-03 : f32
    %4 = vector.broadcast %cst_3 : f32 to vector<8x1xf32>
    %5 = arith.mulf %3, %4 : vector<8x1xf32>
    %cst_4 = arith.constant dense<0.000000e+00> : vector<8xf32>
    %6 = vector.multi_reduction <add>, %1, %cst_4 [1] : vector<8x256xf32> to vector<8xf32>
    %7 = vector.shape_cast %6 : vector<8xf32> to vector<8x1xf32>
    %cst_5 = arith.constant 3.906250e-03 : f32
    %8 = vector.broadcast %cst_5 : f32 to vector<8x1xf32>
    %9 = arith.mulf %7, %8 : vector<8x1xf32>
    %10 = arith.subf %9, %5 : vector<8x1xf32>
    %11 = vector.broadcast %10 : vector<8x1xf32> to vector<8x256xf32>
    %12 = arith.addf %0, %11 : vector<8x256xf32>
    %c0_6 = arith.constant 0 : index
    %c0_7 = arith.constant 0 : index
    %13 = vector.load %arg3[%c0_6, %c0_7] : memref<8x256xf32, #tpu.memory_space<vmem>>, vector<8x256xf32>
    tpu.vector_store %arg3[%c0_6, %c0_7], %12 {strides = array<i32>} : memref<8x256xf32, #tpu.memory_space<vmem>>, vector<8x256xf32>,
    return
  }
  func.func @transform_0(%arg0: i32) -> (i32, i32) {
    %c0_i32 = arith.constant 0 : i32
    %c0_i32_0 = arith.constant 0 : i32
    return %arg0, %c0_i32 : i32, i32
  }
  func.func @transform_1(%arg0: i32) -> (i32, i32) {
    %c0_i32 = arith.constant 0 : i32
    %c0_i32_0 = arith.constant 0 : i32
    return %arg0, %c0_i32 : i32, i32
  }
  func.func @transform_2(%arg0: i32) -> (i32, i32) {
    %c0_i32 = arith.constant 0 : i32
    %c0_i32_0 = arith.constant 0 : i32
    return %arg0, %c0_i32 : i32, i32
  }
}

</mosaic_0001>

<llo_original>
// kernel: tpu_custom_call.1
$region0: #{tpu_custom_call.1}
  #allocation0 [shape = 'u32[]', space=smem, size = 0x4, offset = 0x4, fixed_abs, tag = 'smem constant byte address 0x4 - core index']
  #allocation1 [shape = 'u32[144,128]{1,0:T(1,128)}', space=vmem, size = 0x12000, scoped, tag = 'internal scratch']
  %s0 = inlined_call_operand.hbm [shape: f32[8,256], index: 0, kind: input, shape index: {}]
  %s1 = inlined_call_operand.hbm [shape: f32[8,256], index: 1, kind: input, shape index: {}]
  %s2 = inlined_call_operand.hbm [shape: f32[8,256], index: 2, kind: output, shape index: {}]
  %s3 = sld [smem:[#allocation0]]
  $region26: #{tpu_custom_call.1} parent=0
    _
  %s5 = ssub.s32 1, %s3
  %s6 = scalar_select 0, %s5, %s3
  $region1: #{tpu_custom_call.1} parent=0
    #allocation2 [shape = 'u8[8192]{0}', space=vmem, size = 0x2000, scoped, tag = 'input window, operand 0, single buffered']
    #allocation3 [shape = 's32[1]{0}', space=sflag, size = 0x4, scoped, tag = 'scoped memory for tpu_custom_call.1']
    #allocation4 [shape = 's32[1]{0}', space=sflag, size = 0x4, scoped, tag = 'scoped memory for tpu_custom_call.1']
    #allocation5 [shape = 'u8[8192]{0}', space=vmem, size = 0x2000, scoped, tag = 'input window, operand 1, single buffered']
    #allocation6 [shape = 's32[1]{0}', space=sflag, size = 0x4, scoped, tag = 'scoped memory for tpu_custom_call.1']
    #allocation7 [shape = 'u8[8192]{0}', space=vmem, size = 0x2000, scoped, tag = 'output window, operand 0, single buffered']
    %7 = vsyncpa [#allocation3], 0
    %8 = vsyncpa [#allocation6], 0
    %9 = vsyncpa [#allocation4], 0
    // Predicated region
    $region2: #{tpu_custom_call.1} parent=1 // pred_check
      _
    $region3: #{tpu_custom_call.1} parent=1 // pred_check_branch
      %11 = sbr.rel (0) target = $region5
    $region4: #{tpu_custom_call.1} parent=1 // pred_region
      %s13 = ssub.s32 256, 256
      %14 = vsyncadd [#allocation3], %s13
      %s16 = sshll.u32 [#allocation2], 4
      %s17 = int_to_ptr.vmem [resolvable:$true] %s16
      %19 = dma.hbm_to_vmem [thread:$0]  %s0, 256, %s17, [#allocation3]
    $region5: #{tpu_custom_call.1} parent=1 // pred_fallthru
      _
    // Predicated region
    $region6: #{tpu_custom_call.1} parent=1 // pred_check
      _
    $region7: #{tpu_custom_call.1} parent=1 // pred_check_branch
      %21 = sbr.rel (0) target = $region9
    $region8: #{tpu_custom_call.1} parent=1 // pred_region
      %s23 = ssub.s32 256, 256
      %24 = vsyncadd [#allocation6], %s23
      %s26 = sshll.u32 [#allocation5], 4
      %s27 = int_to_ptr.vmem [resolvable:$true] %s26
      %29 = dma.hbm_to_vmem [thread:$0]  %s1, 256, %s27, [#allocation6]
    $region9: #{tpu_custom_call.1} parent=1 // pred_fallthru
      _
    // Predicated region
    $region10: #{tpu_custom_call.1} parent=1 // pred_check
      _
    $region11: #{tpu_custom_call.1} parent=1 // pred_check_branch
      %31 = sbr.rel (0) target = $region13
    $region12: #{tpu_custom_call.1} parent=1 // pred_region
      %32 = dma.done [#allocation3], 256
    $region13: #{tpu_custom_call.1} parent=1 // pred_fallthru
      _
    // Predicated region
    $region14: #{tpu_custom_call.1} parent=1 // pred_check
      _
    $region15: #{tpu_custom_call.1} parent=1 // pred_check_branch
      %34 = sbr.rel (0) target = $region17
    $region16: #{tpu_custom_call.1} parent=1 // pred_region
      %35 = dma.done [#allocation6], 256
    $region17: #{tpu_custom_call.1} parent=1 // pred_fallthru
      _
    %v36 = vld [vmem:[#allocation2] sm:$0xff]
    %v37 = vld [vmem:[#allocation2 + $0x8] sm:$0xff]
    %v38 = vld [vmem:[#allocation5] sm:$0xff]
    %v39 = vld [vmem:[#allocation5 + $0x8] sm:$0xff]
    %v40 = vadd.f32 %v36, %v37
    %41 = vadd.xlane.f32.xlu0 %v40
    %v42 = vpop.xlane.xlu0 %41
    %v43 = vmul.f32 %v42, 0.00390625
    %v44 = vadd.f32 %v38, %v39
    %45 = vadd.xlane.f32.xlu0 %v44
    %v46 = vpop.xlane.xlu0 %45
    %v47 = vmul.f32 %v46, 0.00390625
    %v48 = vsub.f32 %v47, %v43
    %v49 = vadd.f32 %v36, %v48
    %v50 = vadd.f32 %v37, %v48
    %51 = vst [vmem:[#allocation7] sm:$0xff] %v49
    %52 = vst [vmem:[#allocation7 + $0x8] sm:$0xff] %v50
    // Predicated region
    $region18: #{tpu_custom_call.1} parent=1 // pred_check
      _
    $region19: #{tpu_custom_call.1} parent=1 // pred_check_branch
      %54 = sbr.rel (0) target = $region21
    $region20: #{tpu_custom_call.1} parent=1 // pred_region
      %s56 = ssub.s32 256, 256
      %57 = vsyncadd [#allocation4], %s56
      %s59 = sshll.u32 [#allocation7], 4
      %s60 = int_to_ptr.vmem [resolvable:$true] %s59
      %62 = dma.vmem_to_hbm [thread:$0]  %s60, 256, %s2, [#allocation4]
    $region21: #{tpu_custom_call.1} parent=1 // pred_fallthru
      _
    // Predicated region
    $region22: #{tpu_custom_call.1} parent=1 // pred_check
      _
    $region23: #{tpu_custom_call.1} parent=1 // pred_check_branch
      %64 = sbr.rel (0) target = $region25
    $region24: #{tpu_custom_call.1} parent=1 // pred_region
      %65 = dma.done [#allocation4], 256
    $region25: #{tpu_custom_call.1} parent=1 // pred_fallthru
      _
    %66 = vsyncpa [#allocation3], 1
    %67 = vsyncpa [#allocation6], 1
    %68 = vsyncpa [#allocation4], 1

</llo_original>
